<compile_context>
chip_gen: v7x
topology: tpu7x:2x2x1
jax: 0.10.0
libtpu: 0.0.40
codegen_flags: <defaults>
</compile_context>

<pallas_src>
import functools

import jax
import jax.numpy as jnp
from jax.experimental import pallas as pl
from jax.experimental.pallas import tpu as pltpu


def _round_up(x, m):
    return -(-x // m) * m


def _tpu_params():
    """Generation-aware (vmem block budget, scoped vmem limit, #TCs, bf16 VALU)."""
    kind = ""
    try:
        kind = jax.devices()[0].device_kind.lower()
    except Exception:
        pass
    if "v7" in kind or "7x" in kind:
        # 64 MiB physical VMEM per TensorCore, 2 TensorCores, bf16 VALU.
        return 36 << 20, 48 << 20, 2, True
    if "v6" in kind:
        # 128 MiB VMEM, 1 TensorCore, bf16 VALU.
        return 80 << 20, 100 << 20, 1, True
    if "v5e" in kind or "v5 lite" in kind or "v5lite" in kind:
        # 128 MiB VMEM, 1 TensorCore, no bf16 VALU.
        return 80 << 20, 100 << 20, 1, False
    if "v5p" in kind or "v5" in kind or "v4" in kind:
        # Megacore generations: 2 TCs, large VMEM; stay a bit conservative.
        return 48 << 20, 64 << 20, 2, False
    # Unknown / older generation: conservative budget, default scoped limit.
    return 8 << 20, None, 1, False


# ---------------------------------------------------------------------------
# Kernels
# ---------------------------------------------------------------------------
def _gab_fused_kernel(x_ref, w1t_ref, b1_ref, w2t_ref, b2_ref, o_ref, *,
                      inv_hw, low_precision_rescale):
    # Global average pool: f32 accumulation over the lane (HW) axis, one
    # precomputed reciprocal.  (TN, C, HWp) -> (TN, C).
    pooled = jnp.sum(x_ref[...].astype(jnp.float32), axis=-1) * inv_hw
    # 1x1 convs as lane-dense matmuls on the (TN, C) layout.
    z1 = jnp.dot(pooled, w1t_ref[...], preferred_element_type=jnp.float32)
    z1 = jnp.maximum(z1 + b1_ref[...], 0.0)                          # (TN, Cmid)
    z2 = jnp.dot(z1, w2t_ref[...], preferred_element_type=jnp.float32)
    gate = jax.nn.sigmoid(z2 + b2_ref[...])                          # (TN, C) f32
    # Channel-wise rescale as one whole-block multiply (full-width stores).
    if low_precision_rescale:
        o_ref[...] = x_ref[...] * gate.astype(o_ref.dtype)[:, :, None]
    else:
        o_ref[...] = (x_ref[...].astype(jnp.float32)
                      * gate[:, :, None]).astype(o_ref.dtype)


def _gab_gate_kernel(x_ref, w1t_ref, b1_ref, w2t_ref, b2_ref, gate_ref,
                     acc_ref, *, inv_hw):
    # Pass 1 of the large-C*HW fallback: HW-tiled pooling + gate matmuls.
    k = pl.program_id(1)

    @pl.when(k == 0)
    def _():
        acc_ref[...] = jnp.zeros_like(acc_ref)

    acc_ref[...] += jnp.sum(x_ref[...].astype(jnp.float32), axis=-1)  # (1, C)

    @pl.when(k == pl.num_programs(1) - 1)
    def _():
        pooled = acc_ref[...] * inv_hw                                # (1, C)
        z1 = jnp.dot(pooled, w1t_ref[...], preferred_element_type=jnp.float32)
        z1 = jnp.maximum(z1 + b1_ref[...], 0.0)
        z2 = jnp.dot(z1, w2t_ref[...], preferred_element_type=jnp.float32)
        gate_ref[0] = jax.nn.sigmoid(z2 + b2_ref[...])                # (1, C)


def _gab_rescale_kernel(x_ref, gate_ref, o_ref, *, low_precision_rescale):
    # Pass 2 of the fallback: HW-tiled channel rescale with a precomputed gate.
    gate = gate_ref[0][:, :, None]                                    # (1, C, 1)
    if low_precision_rescale:
        o_ref[...] = x_ref[...] * gate.astype(o_ref.dtype)
    else:
        o_ref[...] = (x_ref[...].astype(jnp.float32) * gate).astype(o_ref.dtype)


# ---------------------------------------------------------------------------
# Wrapper
# ---------------------------------------------------------------------------
def gab_forward(x, w1, b1, w2, b2, *, force_two_pass=False, spatial_tile=None):
    """x: (N, C, H, W); w1: (Cmid, C); b1: (Cmid,); w2: (C, Cmid); b2: (C,)."""
    N, C, H, W = x.shape
    Cmid = w1.shape[0]
    HW = H * W
    itemsize = jnp.dtype(x.dtype).itemsize

    budget, vmem_limit, n_cores, bf16_valu = _tpu_params()
    low_precision_rescale = bool(bf16_valu) and x.dtype == jnp.bfloat16

    # Physical (sublane-padded) footprint of one batch row's (C, HW) slab.
    sublane = 8 * max(1, 4 // itemsize)
    c_pad = _round_up(C, sublane)

    w1t = jnp.transpose(w1)                 # (C, Cmid)
    w2t = jnp.transpose(w2)                 # (Cmid, C)
    b1_2d = b1.reshape(1, Cmid)
    b2_2d = b2.reshape(1, C)

    x_flat = x.reshape(N, C, HW)
    hw128 = _round_up(HW, 128)              # lane-dense output width
    fused_row_bytes = c_pad * hw128 * itemsize
    use_fused = (not force_two_pass) and (4 * fused_row_bytes <= budget)

    if use_fused:
        # ---- single pass: one (TN, C, HWp) slab per grid step -------------
        if hw128 != HW:
            x_flat = jnp.pad(x_flat, ((0, 0), (0, 0), (0, hw128 - HW)))
        tn = max(1, min(budget // (4 * fused_row_bytes), N))
        if n_cores > 1 and N >= n_cores:
            tn = min(tn, pl.cdiv(N, n_cores))   # keep every TensorCore busy
        grid_n = pl.cdiv(N, tn)                 # ragged trailing block is fine

        cost = pl.CostEstimate(
            flops=2 * N * C * HW + 4 * N * C * Cmid,
            transcendentals=N * C,
            bytes_accessed=2 * N * C * HW * itemsize
            + (2 * C * Cmid + C + Cmid) * 4,
        )
        kernel = functools.partial(
            _gab_fused_kernel, inv_hw=1.0 / HW,
            low_precision_rescale=low_precision_rescale)

        out = pl.pallas_call(
            kernel,
            out_shape=jax.ShapeDtypeStruct((N, C, hw128), x.dtype),
            grid_spec=pltpu.PrefetchScalarGridSpec(
                num_scalar_prefetch=0,
                grid=(grid_n,),
                in_specs=[
                    pl.BlockSpec((tn, C, hw128), lambda n: (n, 0, 0)),
                    pl.BlockSpec((C, Cmid), lambda n: (0, 0)),
                    pl.BlockSpec((1, Cmid), lambda n: (0, 0)),
                    pl.BlockSpec((Cmid, C), lambda n: (0, 0)),
                    pl.BlockSpec((1, C), lambda n: (0, 0)),
                ],
                out_specs=pl.BlockSpec((tn, C, hw128), lambda n: (n, 0, 0)),
            ),
            compiler_params=pltpu.CompilerParams(
                dimension_semantics=("parallel",),
                vmem_limit_bytes=vmem_limit,
            ),
            cost_estimate=cost,
            # NOTE: pass input_output_aliases={0: 0} from the caller if x is
            # dead after this op (halves peak HBM); omitted here because the
            # demo reuses x for the reference check.
        )(x_flat, w1t, b1_2d, w2t, b2_2d)
        out_hw = hw128
    else:
        # ---- two passes: HW-tiled pool->gate, then HW-tiled rescale --------
        # TODO(synk): extreme channel counts (c_pad * 128 * itemsize blocks
        # exceeding the budget) would additionally need channel tiling.
        if spatial_tile is None:
            thw = max(1, budget // (4 * c_pad * 128 * itemsize)) * 128
        else:
            thw = _round_up(spatial_tile, 128)
        thw = min(thw, hw128)
        hw_pad = _round_up(HW, thw)             # multiple of thw -> no ragged HW
        if hw_pad != HW:
            x_flat = jnp.pad(x_flat, ((0, 0), (0, 0), (0, hw_pad - HW)))
        nb_hw = hw_pad // thw

        gate_kernel = functools.partial(_gab_gate_kernel, inv_hw=1.0 / HW)
        gate = pl.pallas_call(
            gate_kernel,
            out_shape=jax.ShapeDtypeStruct((N, 1, C), jnp.float32),
            grid_spec=pltpu.PrefetchScalarGridSpec(
                num_scalar_prefetch=0,
                grid=(N, nb_hw),
                in_specs=[
                    pl.BlockSpec((1, C, thw), lambda n, k: (n, 0, k)),
                    pl.BlockSpec((C, Cmid), lambda n, k: (0, 0)),
                    pl.BlockSpec((1, Cmid), lambda n, k: (0, 0)),
                    pl.BlockSpec((Cmid, C), lambda n, k: (0, 0)),
                    pl.BlockSpec((1, C), lambda n, k: (0, 0)),
                ],
                out_specs=pl.BlockSpec((1, 1, C), lambda n, k: (n, 0, 0)),
                scratch_shapes=[pltpu.VMEM((1, C), jnp.float32)],
            ),
            compiler_params=pltpu.CompilerParams(
                dimension_semantics=("parallel", "arbitrary"),
                vmem_limit_bytes=vmem_limit,
            ),
        )(x_flat, w1t, b1_2d, w2t, b2_2d)

        rescale_kernel = functools.partial(
            _gab_rescale_kernel, low_precision_rescale=low_precision_rescale)
        out = pl.pallas_call(
            rescale_kernel,
            out_shape=jax.ShapeDtypeStruct((N, C, hw_pad), x.dtype),
            grid_spec=pltpu.PrefetchScalarGridSpec(
                num_scalar_prefetch=0,
                grid=(N, nb_hw),
                in_specs=[
                    pl.BlockSpec((1, C, thw), lambda n, k: (n, 0, k)),
                    pl.BlockSpec((1, 1, C), lambda n, k: (n, 0, 0)),
                ],
                out_specs=pl.BlockSpec((1, C, thw), lambda n, k: (n, 0, k)),
            ),
            compiler_params=pltpu.CompilerParams(
                dimension_semantics=("parallel", "parallel"),
                vmem_limit_bytes=vmem_limit,
            ),
        )(x_flat, gate)
        out_hw = hw_pad

    if out_hw != HW:
        out = out[:, :, :HW]
    return out.reshape(N, C, H, W)


# ---------------------------------------------------------------------------
# Reference + demo
# ---------------------------------------------------------------------------
def gab_reference(x, w1, b1, w2, b2):
    pooled = jnp.mean(x, axis=(2, 3), keepdims=True)                 # (N,C,1,1)
    z1 = jnp.einsum('mc,nchw->nmhw', w1, pooled) + b1[None, :, None, None]
    z1 = jnp.maximum(z1, 0.0)
    z2 = jnp.einsum('cm,nmhw->nchw', w2, z1) + b2[None, :, None, None]
    z2 = jax.nn.sigmoid(z2)
    return x * z2


if __name__ == "__main__":
    def make_inputs(key, n, c, h, w, reduction=4):
        cmid = c // reduction
        kx, k1, k2, k3, k4 = jax.random.split(key, 5)
        x = jax.random.normal(kx, (n, c, h, w), dtype=jnp.float32)
        w1 = jax.random.normal(k1, (cmid, c), dtype=jnp.float32) * 0.1
        b1 = jax.random.normal(k2, (cmid,), dtype=jnp.float32) * 0.1
        w2 = jax.random.normal(k3, (c, cmid), dtype=jnp.float32) * 0.1
        b2 = jax.random.normal(k4, (c,), dtype=jnp.float32) * 0.1
        return x, w1, b1, w2, b2

    k0, k1 = jax.random.split(jax.random.PRNGKey(0))

    # GAB(input_dim=8, reduction=4): fused single-pass path, HW multiple of 128.
    x, w1, b1, w2, b2 = make_inputs(k0, 4, 8, 16, 16)
    out = jax.block_until_ready(gab_forward(x, w1, b1, w2, b2))
    ref = gab_reference(x, w1, b1, w2, b2)
    assert out.shape == x.shape
    assert jnp.allclose(out, ref, atol=1e-5, rtol=1e-5), "fused path mismatch"

    # Ragged batch + HW not a multiple of 128 (cdiv grid + lane padding).
    x2, w1b, b1b, w2b, b2b = make_inputs(k1, 3, 8, 7, 7)
    out2 = jax.block_until_ready(gab_forward(x2, w1b, b1b, w2b, b2b))
    ref2 = gab_reference(x2, w1b, b1b, w2b, b2b)
    assert jnp.allclose(out2, ref2, atol=1e-5, rtol=1e-5), "padded path mismatch"

    # Force the two-pass (HW-tiled) large-C*HW fallback with a small tile.
    out3 = jax.block_until_ready(
        gab_forward(x, w1, b1, w2, b2, force_two_pass=True, spatial_tile=128))
    assert jnp.allclose(out3, ref, atol=1e-5, rtol=1e-5), "two-pass path mismatch"

    print("KERNEL_OK")
</pallas_src>

<mosaic_0001>
module attributes {stable_mosaic.version = 11 : i64} {
  func.func @_gab_fused_kernel(%arg0: i32, %arg1: memref<4x8x256xf32, #tpu.memory_space<vmem>>, %arg2: memref<8x2xf32, #tpu.memory_space<vmem>>, %arg3: memref<1x2xf32, #tpu.memory_space<vmem>>, %arg4: memref<2x8xf32, #tpu.memory_space<vmem>>, %arg5: memref<1x8xf32, #tpu.memory_space<vmem>>, %arg6: memref<4x8x256xf32, #tpu.memory_space<vmem>>) attributes {dimension_semantics = [#tpu.dimension_semantics<parallel>], iteration_bounds = array<i64: 1>, scalar_prefetch = 0 : i64, scratch_operands = 0 : i64, tpu.core_type = #tpu.core_type<tc>, window_params = [{transform_indices = @transform_0, window_bounds = array<i64: 4, 8, 256>}, {pipeline_mode = #tpu.pipeline_mode<synchronous>, transform_indices = @transform_1, window_bounds = array<i64: 8, 2>}, {pipeline_mode = #tpu.pipeline_mode<synchronous>, transform_indices = @transform_2, window_bounds = array<i64: 1, 2>}, {pipeline_mode = #tpu.pipeline_mode<synchronous>, transform_indices = @transform_3, window_bounds = array<i64: 2, 8>}, {pipeline_mode = #tpu.pipeline_mode<synchronous>, transform_indices = @transform_4, window_bounds = array<i64: 1, 8>}, {transform_indices = @transform_5, window_bounds = array<i64: 4, 8, 256>}]} {
    %c0 = arith.constant 0 : index
    %c0_0 = arith.constant 0 : index
    %c0_1 = arith.constant 0 : index
    %0 = vector.load %arg1[%c0, %c0_0, %c0_1] : memref<4x8x256xf32, #tpu.memory_space<vmem>>, vector<4x8x256xf32>
    %cst = arith.constant dense<0.000000e+00> : vector<4x8xf32>
    %1 = vector.multi_reduction <add>, %0, %cst [2] : vector<4x8x256xf32> to vector<4x8xf32>
    %cst_2 = arith.constant 3.906250e-03 : f32
    %2 = vector.broadcast %cst_2 : f32 to vector<4x8xf32>
    %3 = arith.mulf %1, %2 : vector<4x8xf32>
    %c0_3 = arith.constant 0 : index
    %c0_4 = arith.constant 0 : index
    %4 = vector.load %arg2[%c0_3, %c0_4] : memref<8x2xf32, #tpu.memory_space<vmem>>, vector<8x2xf32>
    %cst_5 = arith.constant dense<0.000000e+00> : vector<4x2xf32>
    %5 = tpu.matmul %3, %4, %cst_5 {dimension_numbers = #tpu.dot_dimension_numbers<[1], [0], [0], [1], [0, 0, 1, 1], [], []>} : vector<4x8xf32>, vector<8x2xf32>, vector<4x2xf32> -> vector<4x2xf32>
    %c0_6 = arith.constant 0 : index
    %c0_7 = arith.constant 0 : index
    %6 = vector.load %arg3[%c0_6, %c0_7] : memref<1x2xf32, #tpu.memory_space<vmem>>, vector<1x2xf32>
    %7 = vector.broadcast %6 : vector<1x2xf32> to vector<4x2xf32>
    %8 = arith.addf %5, %7 : vector<4x2xf32>
    %cst_8 = arith.constant 0.000000e+00 : f32
    %9 = vector.broadcast %cst_8 : f32 to vector<4x2xf32>
    %10 = arith.maximumf %8, %9 : vector<4x2xf32>
    %c0_9 = arith.constant 0 : index
    %c0_10 = arith.constant 0 : index
    %11 = vector.load %arg4[%c0_9, %c0_10] : memref<2x8xf32, #tpu.memory_space<vmem>>, vector<2x8xf32>
    %cst_11 = arith.constant dense<0.000000e+00> : vector<4x8xf32>
    %12 = tpu.matmul %10, %11, %cst_11 {dimension_numbers = #tpu.dot_dimension_numbers<[1], [0], [0], [1], [0, 0, 1, 1], [], []>} : vector<4x2xf32>, vector<2x8xf32>, vector<4x8xf32> -> vector<4x8xf32>
    %c0_12 = arith.constant 0 : index
    %c0_13 = arith.constant 0 : index
    %13 = vector.load %arg5[%c0_12, %c0_13] : memref<1x8xf32, #tpu.memory_space<vmem>>, vector<1x8xf32>
    %14 = vector.broadcast %13 : vector<1x8xf32> to vector<4x8xf32>
    %15 = arith.addf %12, %14 : vector<4x8xf32>
    %16 = arith.negf %15 : vector<4x8xf32>
    %17 = math.exp %16 : vector<4x8xf32>
    %cst_14 = arith.constant 1.000000e+00 : f32
    %18 = vector.broadcast %cst_14 : f32 to vector<4x8xf32>
    %19 = arith.addf %18, %17 : vector<4x8xf32>
    %20 = arith.divf %18, %19 : vector<4x8xf32>
    %c0_15 = arith.constant 0 : index
    %c0_16 = arith.constant 0 : index
    %c0_17 = arith.constant 0 : index
    %21 = vector.load %arg1[%c0_15, %c0_16, %c0_17] : memref<4x8x256xf32, #tpu.memory_space<vmem>>, vector<4x8x256xf32>
    %22 = vector.shape_cast %20 : vector<4x8xf32> to vector<4x8x1xf32>
    %23 = vector.broadcast %22 : vector<4x8x1xf32> to vector<4x8x256xf32>
    %24 = arith.mulf %21, %23 : vector<4x8x256xf32>
    %c0_18 = arith.constant 0 : index
    %c0_19 = arith.constant 0 : index
    %c0_20 = arith.constant 0 : index
    %25 = vector.load %arg6[%c0_18, %c0_19, %c0_20] : memref<4x8x256xf32, #tpu.memory_space<vmem>>, vector<4x8x256xf32>
    tpu.vector_store %arg6[%c0_18, %c0_19, %c0_20], %24 {strides = array<i32>} : memref<4x8x256xf32, #tpu.memory_space<vmem>>, vector<4x8x256xf32>,
    return
  }
  func.func @transform_0(%arg0: i32) -> (i32, i32, i32) {
    %c0_i32 = arith.constant 0 : i32
    %c0_i32_0 = arith.constant 0 : i32
    %c0_i32_1 = arith.constant 0 : i32
    return %arg0, %c0_i32, %c0_i32_0 : i32, i32, i32
  }
  func.func @transform_1(%arg0: i32) -> (i32, i32) {
    %c0_i32 = arith.constant 0 : i32
    %c0_i32_0 = arith.constant 0 : i32
    %c0_i32_1 = arith.constant 0 : i32
    return %c0_i32, %c0_i32_0 : i32, i32
  }
  func.func @transform_2(%arg0: i32) -> (i32, i32) {
    %c0_i32 = arith.constant 0 : i32
    %c0_i32_0 = arith.constant 0 : i32
    %c0_i32_1 = arith.constant 0 : i32
    return %c0_i32, %c0_i32_0 : i32, i32
  }
  func.func @transform_3(%arg0: i32) -> (i32, i32) {
    %c0_i32 = arith.constant 0 : i32
    %c0_i32_0 = arith.constant 0 : i32
    %c0_i32_1 = arith.constant 0 : i32
    return %c0_i32, %c0_i32_0 : i32, i32
  }
  func.func @transform_4(%arg0: i32) -> (i32, i32) {
    %c0_i32 = arith.constant 0 : i32
    %c0_i32_0 = arith.constant 0 : i32
    %c0_i32_1 = arith.constant 0 : i32
    return %c0_i32, %c0_i32_0 : i32, i32
  }
  func.func @transform_5(%arg0: i32) -> (i32, i32, i32) {
    %c0_i32 = arith.constant 0 : i32
    %c0_i32_0 = arith.constant 0 : i32
    %c0_i32_1 = arith.constant 0 : i32
    return %arg0, %c0_i32, %c0_i32_0 : i32, i32, i32
  }
}

</mosaic_0001>

<llo_original>
// kernel: tpu_custom_call.1
$region0: #{tpu_custom_call.1}
  #allocation0 [shape = 'u32[]', space=smem, size = 0x4, offset = 0x4, fixed_abs, tag = 'smem constant byte address 0x4 - core index']
  #allocation1 [shape = 'u32[144,128]{1,0:T(1,128)}', space=vmem, size = 0x12000, scoped, tag = 'internal scratch']
  %s0 = inlined_call_operand.hbm [shape: f32[4,8,256], index: 0, kind: input, shape index: {}]
  %s1 = inlined_call_operand.vmem [shape: f32[8,2], index: 1, kind: input, shape index: {}]
  %s2 = inlined_call_operand.vmem [shape: f32[1,2], index: 2, kind: input, shape index: {}]
  %s3 = inlined_call_operand.vmem [shape: f32[2,8], index: 3, kind: input, shape index: {}]
  %s4 = inlined_call_operand.vmem [shape: f32[1,8], index: 4, kind: input, shape index: {}]
  %s5 = inlined_call_operand.hbm [shape: f32[4,8,256], index: 5, kind: output, shape index: {}]
  %s6 = sld [smem:[#allocation0]]
  $region34: #{tpu_custom_call.1} parent=0
    _
  %s8 = ssub.s32 1, %s6
  %s9 = scalar_select 0, %s8, %s6
  $region1: #{tpu_custom_call.1} parent=0
    #allocation2 [shape = 'u8[32768]{0}', space=vmem, size = 0x8000, scoped, tag = 'input window, operand 0, single buffered']
    #allocation3 [shape = 's32[1]{0}', space=sflag, size = 0x4, scoped, tag = 'scoped memory for tpu_custom_call.1']
    #allocation4 [shape = 's32[1]{0}', space=sflag, size = 0x4, scoped, tag = 'scoped memory for tpu_custom_call.1']
    #allocation5 [shape = 'u8[32768]{0}', space=vmem, size = 0x8000, scoped, tag = 'output window, operand 0, single buffered']
    %10 = vsyncpa [#allocation3], 0
    %11 = vsyncpa [#allocation4], 0
    // Predicated region
    $region2: #{tpu_custom_call.1} parent=1 // pred_check
      _
    $region3: #{tpu_custom_call.1} parent=1 // pred_check_branch
      %13 = sbr.rel (0) target = $region5
    $region4: #{tpu_custom_call.1} parent=1 // pred_region
      %s15 = ssub.s32 1024, 1024
      %16 = vsyncadd [#allocation3], %s15
      %s17 = sshll.u32 [#allocation2], 4
      %s18 = int_to_ptr.vmem [resolvable:$true] %s17
      %23 = dma.hbm_to_vmem [thread:$0]  %s0, 1024, %s18, [#allocation3], 256, 256, 16
    $region5: #{tpu_custom_call.1} parent=1 // pred_fallthru
      _
    // Predicated region
    $region6: #{tpu_custom_call.1} parent=1 // pred_check
      _
    $region7: #{tpu_custom_call.1} parent=1 // pred_check_branch
      %25 = sbr.rel (0) target = $region9
    $region8: #{tpu_custom_call.1} parent=1 // pred_region
      _
    $region9: #{tpu_custom_call.1} parent=1 // pred_fallthru
      _
    // Predicated region
    $region10: #{tpu_custom_call.1} parent=1 // pred_check
      _
    $region11: #{tpu_custom_call.1} parent=1 // pred_check_branch
      %27 = sbr.rel (0) target = $region13
    $region12: #{tpu_custom_call.1} parent=1 // pred_region
      _
    $region13: #{tpu_custom_call.1} parent=1 // pred_fallthru
      _
    // Predicated region
    $region14: #{tpu_custom_call.1} parent=1 // pred_check
      _
    $region15: #{tpu_custom_call.1} parent=1 // pred_check_branch
      %29 = sbr.rel (0) target = $region17
    $region16: #{tpu_custom_call.1} parent=1 // pred_region
      _
    $region17: #{tpu_custom_call.1} parent=1 // pred_fallthru
      _
    // Predicated region
    $region18: #{tpu_custom_call.1} parent=1 // pred_check
      _
    $region19: #{tpu_custom_call.1} parent=1 // pred_check_branch
      %31 = sbr.rel (0) target = $region21
    $region20: #{tpu_custom_call.1} parent=1 // pred_region
      _
    $region21: #{tpu_custom_call.1} parent=1 // pred_fallthru
      _
    // Predicated region
    $region22: #{tpu_custom_call.1} parent=1 // pred_check
      _
    $region23: #{tpu_custom_call.1} parent=1 // pred_check_branch
      %33 = sbr.rel (0) target = $region25
    $region24: #{tpu_custom_call.1} parent=1 // pred_region
      %34 = dma.done [#allocation3], 1024
    $region25: #{tpu_custom_call.1} parent=1 // pred_fallthru
      _
    %v35 = vld [vmem:[#allocation2] sm:$0xff]
    %v36 = vld [vmem:[#allocation2 + $0x8] sm:$0xff]
    %v37 = vld [vmem:[#allocation2 + $0x10] sm:$0xff]
    %v38 = vld [vmem:[#allocation2 + $0x18] sm:$0xff]
    %v39 = vld [vmem:[#allocation2 + $0x20] sm:$0xff]
    %v40 = vld [vmem:[#allocation2 + $0x28] sm:$0xff]
    %v41 = vld [vmem:[#allocation2 + $0x30] sm:$0xff]
    %v42 = vld [vmem:[#allocation2 + $0x38] sm:$0xff]
    %v43 = vadd.f32 %v35, %v36
    %44 = vadd.xlane.f32.xlu0 %v43
    %v45 = vpop.xlane.xlu0 %44
    %v46 = vadd.f32 %v37, %v38
    %47 = vadd.xlane.f32.xlu0 %v46
    %v48 = vpop.xlane.xlu0 %47
    %v49 = vadd.f32 %v39, %v40
    %50 = vadd.xlane.f32.xlu0 %v49
    %v51 = vpop.xlane.xlu0 %50
    %v52 = vadd.f32 %v41, %v42
    %53 = vadd.xlane.f32.xlu0 %v52
    %v54 = vpop.xlane.xlu0 %53
    %v55 = vmul.f32 %v45, 0.00390625
    %v56 = vmul.f32 %v48, 0.00390625
    %v57 = vmul.f32 %v51, 0.00390625
    %v58 = vmul.f32 %v54, 0.00390625
    %v59 = vld [vmem:[%s1] sm:$0xff]
    %v60 = vld [vmem:[%s2] sm:$0x1]
    %v62 = vlaneseq
    %v63 = vshrl.u32 %v62, 7
    %v64 = vsub.s32 0, %v63
    %v65 = vrot.slane %v60, %v64
    %v71 = vlaneseq
    %v72 = vand.u32 %v71, 127
    %v73 = vlaneseq
    %v74 = vshrl.u32 %v73, 7
    %v75 = vsub.s32 %v72, %v74
    %v76 = vrot.slane %v55, %v75
    %v77 = vlaneseq
    %v78 = vshrl.u32 %v77, 7
    %v79 = vsub.s32 %v72, %v78
    %v80 = vrot.slane %v56, %v79
    %v81 = vlaneseq
    %v82 = vshrl.u32 %v81, 7
    %v83 = vsub.s32 %v72, %v82
    %v84 = vrot.slane %v57, %v83
    %v85 = vlaneseq
    %v86 = vshrl.u32 %v85, 7
    %v87 = vsub.s32 %v72, %v86
    %v88 = vrot.slane %v58, %v87
    %vm89 = vcmask 1041409
    %v90 = vsel %vm89, %v80, %v76
    %vm91 = vcmask 1042434
    %v92 = vsel %vm91, %v84, %v90
    %vm93 = vcmask 1043459
    %v94 = vsel %vm93, %v88, %v92
    %vm95 = vcmask 64512
    %v96 = vsel %vm95, %v94, 0
    %98 = vmatprep.subr.mxu0 0.0
    %99 = vmatpush1.msra.mxu0 %v59
    %100 = vmatprep.subr.mxu0 0.0
    %101 = vmatpush1.msra.mxu0 0.0
    %102 = vmatprep.subr.mxu0 0.0
    %103 = vmatpush1.msra.mxu0 0.0
    %104 = vmatprep.subr.mxu0 0.0
    %105 = vmatpush1.msra.mxu0 0.0
    %106 = vmatprep.subr.mxu0 0.0
    %107 = vmatpush1.msra.mxu0 0.0
    %108 = vmatprep.subr.mxu0 0.0
    %109 = vmatpush1.msra.mxu0 0.0
    %110 = vmatprep.subr.mxu0 0.0
    %111 = vmatpush1.msra.mxu0 0.0
    %112 = vmatprep.subr.mxu0 0.0
    %113 = vmatpush1.msra.mxu0 0.0
    %114 = vmatprep.subr.mxu0 0.0
    %115 = vmatpush1.msra.mxu0 0.0
    %116 = vmatprep.subr.mxu0 0.0
    %117 = vmatpush1.msra.mxu0 0.0
    %118 = vmatprep.subr.mxu0 0.0
    %119 = vmatpush1.msra.mxu0 0.0
    %120 = vmatprep.subr.mxu0 0.0
    %121 = vmatpush1.msra.mxu0 0.0
    %122 = vmatprep.subr.mxu0 0.0
    %123 = vmatpush1.msra.mxu0 0.0
    %124 = vmatprep.subr.mxu0 0.0
    %125 = vmatpush1.msra.mxu0 0.0
    %126 = vmatprep.subr.mxu0 0.0
    %127 = vmatpush1.msra.mxu0 0.0
    %128 = vmatprep.subr.mxu0 0.0
    %129 = vmatpush1.msra.mxu0 0.0
    %130 = vmatprep.subr.mxu0 0.0
    %131 = vmatpush1.msra.mxu0 0.0
    %132 = vmatprep.subr.mxu0 0.0
    %133 = vmatpush1.msra.mxu0 0.0
    %134 = vmatprep.subr.mxu0 0.0
    %135 = vmatpush1.msra.mxu0 0.0
    %136 = vmatprep.subr.mxu0 0.0
    %137 = vmatpush1.msra.mxu0 0.0
    %138 = vmatprep.subr.mxu0 0.0
    %139 = vmatpush1.msra.mxu0 0.0
    %140 = vmatprep.subr.mxu0 0.0
    %141 = vmatpush1.msra.mxu0 0.0
    %142 = vmatprep.subr.mxu0 0.0
    %143 = vmatpush1.msra.mxu0 0.0
    %144 = vmatprep.subr.mxu0 0.0
    %145 = vmatpush1.msra.mxu0 0.0
    %146 = vmatprep.subr.mxu0 0.0
    %147 = vmatpush1.msra.mxu0 0.0
    %148 = vmatprep.subr.mxu0 0.0
    %149 = vmatpush1.msra.mxu0 0.0
    %150 = vmatprep.subr.mxu0 0.0
    %151 = vmatpush1.msra.mxu0 0.0
    %152 = vmatprep.subr.mxu0 0.0
    %153 = vmatpush1.msra.mxu0 0.0
    %154 = vmatprep.subr.mxu0 0.0
    %155 = vmatpush1.msra.mxu0 0.0
    %156 = vmatprep.subr.mxu0 0.0
    %157 = vmatpush1.msra.mxu0 0.0
    %158 = vmatprep.subr.mxu0 0.0
    %159 = vmatpush1.msra.mxu0 0.0
    %160 = vmatprep.subr.mxu0 0.0
    %161 = vmatpush1.msra.mxu0 0.0
    %162 = vmatprep.mubr.f32.mxu0 0.0
    %163 = vmatmul.mubr.f32.gmra.mrb[0].mxu0 %v96
    %v164 = vpop.f32.mrb[0].mxu0
    %v165 = vadd.f32 %v65, %v164
    %v166 = vpop.f32.mrb[0].mxu0
    %167 = vdwg.mxu0
    %v168 = vmax.f32 %v165, 0.0
    %v169 = vld [vmem:[%s3] sm:$0x3]
    %v170 = vld [vmem:[%s4] sm:$0x1]
    %v172 = vlaneseq
    %v173 = vshrl.u32 %v172, 7
    %v174 = vsub.s32 0, %v173
    %v175 = vrot.slane %v170, %v174
    %vm177 = vcmask 15360
    %v179 = vsel %vm177, %v168, 0
    %vm181 = vcmask 1041408
    %v183 = vsel %vm181, %v169, 0
    %185 = vmatprep.subr.mxu0 0.0
    %186 = vmatpush1.msra.mxu0 %v183
    %187 = vmatprep.subr.mxu0 0.0
    %188 = vmatpush1.msra.mxu0 0.0
    %189 = vmatprep.subr.mxu0 0.0
    %190 = vmatpush1.msra.mxu0 0.0
    %191 = vmatprep.subr.mxu0 0.0
    %192 = vmatpush1.msra.mxu0 0.0
    %193 = vmatprep.subr.mxu0 0.0
    %194 = vmatpush1.msra.mxu0 0.0
    %195 = vmatprep.subr.mxu0 0.0
    %196 = vmatpush1.msra.mxu0 0.0
    %197 = vmatprep.subr.mxu0 0.0
    %198 = vmatpush1.msra.mxu0 0.0
    %199 = vmatprep.subr.mxu0 0.0
    %200 = vmatpush1.msra.mxu0 0.0
    %201 = vmatprep.subr.mxu0 0.0
    %202 = vmatpush1.msra.mxu0 0.0
    %203 = vmatprep.subr.mxu0 0.0
    %204 = vmatpush1.msra.mxu0 0.0
    %205 = vmatprep.subr.mxu0 0.0
    %206 = vmatpush1.msra.mxu0 0.0
    %207 = vmatprep.subr.mxu0 0.0
    %208 = vmatpush1.msra.mxu0 0.0
    %209 = vmatprep.subr.mxu0 0.0
    %210 = vmatpush1.msra.mxu0 0.0
    %211 = vmatprep.subr.mxu0 0.0
    %212 = vmatpush1.msra.mxu0 0.0
    %213 = vmatprep.subr.mxu0 0.0
    %214 = vmatpush1.msra.mxu0 0.0
    %215 = vmatprep.subr.mxu0 0.0
    %216 = vmatpush1.msra.mxu0 0.0
    %217 = vmatprep.subr.mxu0 0.0
    %218 = vmatpush1.msra.mxu0 0.0
    %219 = vmatprep.subr.mxu0 0.0
    %220 = vmatpush1.msra.mxu0 0.0
    %221 = vmatprep.subr.mxu0 0.0
    %222 = vmatpush1.msra.mxu0 0.0
    %223 = vmatprep.subr.mxu0 0.0
    %224 = vmatpush1.msra.mxu0 0.0
    %225 = vmatprep.subr.mxu0 0.0
    %226 = vmatpush1.msra.mxu0 0.0
    %227 = vmatprep.subr.mxu0 0.0
    %228 = vmatpush1.msra.mxu0 0.0
    %229 = vmatprep.subr.mxu0 0.0
    %230 = vmatpush1.msra.mxu0 0.0
    %231 = vmatprep.subr.mxu0 0.0
    %232 = vmatpush1.msra.mxu0 0.0
    %233 = vmatprep.subr.mxu0 0.0
    %234 = vmatpush1.msra.mxu0 0.0
    %235 = vmatprep.subr.mxu0 0.0
    %236 = vmatpush1.msra.mxu0 0.0
    %237 = vmatprep.subr.mxu0 0.0
    %238 = vmatpush1.msra.mxu0 0.0
    %239 = vmatprep.subr.mxu0 0.0
    %240 = vmatpush1.msra.mxu0 0.0
    %241 = vmatprep.subr.mxu0 0.0
    %242 = vmatpush1.msra.mxu0 0.0
    %243 = vmatprep.subr.mxu0 0.0
    %244 = vmatpush1.msra.mxu0 0.0
    %245 = vmatprep.subr.mxu0 0.0
    %246 = vmatpush1.msra.mxu0 0.0
    %247 = vmatprep.subr.mxu0 0.0
    %248 = vmatpush1.msra.mxu0 0.0
    %249 = vmatprep.mubr.f32.mxu0 0.0
    %250 = vmatmul.mubr.f32.gmra.mrb[0].mxu0 %v179
    %v251 = vpop.f32.mrb[0].mxu0
    %v252 = vadd.f32 %v175, %v251
    %v253 = vpop.f32.mrb[0].mxu0
    %254 = vdwg.mxu0
    %v255 = vxor.u32 %v252, 2147483648
    %v256 = vmul.f32 %v255, 1.442695
    %v257 = vpow.pop %v256
    %v258 = vadd.f32 %v257, 1.0
    %v259 = vrcp.pop %v258
    %v260 = vmul.f32 1.0, %v259
    %v261 = vlaneseq
    %v262 = vshrl.u32 %v261, 7
    %v263 = vsub.s32 0, %v262
    %v264 = vrot.slane %v260, %v263
    %266 = vbcast.lane.b32.xlu0 %v264, 256
    %v267 = vpop.permute.xlu0 %266
    %v268 = vlaneseq
    %v269 = vshrl.u32 %v268, 7
    %v270 = vsub.s32 1, %v269
    %v271 = vrot.slane %v260, %v270
    %273 = vbcast.lane.b32.xlu0 %v271, 256
    %v274 = vpop.permute.xlu0 %273
    %v275 = vlaneseq
    %v276 = vshrl.u32 %v275, 7
    %v277 = vsub.s32 2, %v276
    %v278 = vrot.slane %v260, %v277
    %280 = vbcast.lane.b32.xlu0 %v278, 256
    %v281 = vpop.permute.xlu0 %280
    %v282 = vlaneseq
    %v283 = vshrl.u32 %v282, 7
    %v284 = vsub.s32 3, %v283
    %v285 = vrot.slane %v260, %v284
    %287 = vbcast.lane.b32.xlu0 %v285, 256
    %v288 = vpop.permute.xlu0 %287
    %v289 = vmul.f32 %v35, %v267
    %v290 = vmul.f32 %v36, %v267
    %v291 = vmul.f32 %v37, %v274
    %v292 = vmul.f32 %v38, %v274
    %v293 = vmul.f32 %v39, %v281
    %v294 = vmul.f32 %v40, %v281
    %v295 = vmul.f32 %v41, %v288
    %v296 = vmul.f32 %v42, %v288
    %297 = vst [vmem:[#allocation5] sm:$0xff] %v289
    %298 = vst [vmem:[#allocation5 + $0x8] sm:$0xff] %v290
    %299 = vst [vmem:[#allocation5 + $0x10] sm:$0xff] %v291
    %300 = vst [vmem:[#allocation5 + $0x18] sm:$0xff] %v292
    %301 = vst [vmem:[#allocation5 + $0x20] sm:$0xff] %v293
    %302 = vst [vmem:[#allocation5 + $0x28] sm:$0xff] %v294
    %303 = vst [vmem:[#allocation5 + $0x30] sm:$0xff] %v295
    %304 = vst [vmem:[#allocation5 + $0x38] sm:$0xff] %v296
    // Predicated region
    $region26: #{tpu_custom_call.1} parent=1 // pred_check
      _
    $region27: #{tpu_custom_call.1} parent=1 // pred_check_branch
      %306 = sbr.rel (0) target = $region29
    $region28: #{tpu_custom_call.1} parent=1 // pred_region
      %s308 = ssub.s32 1024, 1024
      %309 = vsyncadd [#allocation4], %s308
      %s310 = sshll.u32 [#allocation5], 4
      %s311 = int_to_ptr.vmem [resolvable:$true] %s310
      %316 = dma.vmem_to_hbm [thread:$0]  %s311, 1024, %s5, [#allocation4], 256, 256, 16
    $region29: #{tpu_custom_call.1} parent=1 // pred_fallthru
      _
    // Predicated region
    $region30: #{tpu_custom_call.1} parent=1 // pred_check
      _
    $region31: #{tpu_custom_call.1} parent=1 // pred_check_branch
      %318 = sbr.rel (0) target = $region33
    $region32: #{tpu_custom_call.1} parent=1 // pred_region
      %319 = dma.done [#allocation4], 1024
    $region33: #{tpu_custom_call.1} parent=1 // pred_fallthru
      _
    %320 = vsyncpa [#allocation3], 1
    %321 = vsyncpa [#allocation4], 1

</llo_original>
